<compile_context>
chip_gen: v6e
topology: v6e:2x2x1
jax: 0.10.0
libtpu: 0.0.40
codegen_flags: <defaults>
</compile_context>

<pallas_src>
import functools

import jax
import jax.numpy as jnp
from jax.experimental import pallas as pl
from jax.experimental.pallas import tpu as pltpu


# --------------------------------------------------------------------------
# Fused kernel: ReLU + ConvTranspose2d(k,2,1) + folded BN, one batch chunk
# --------------------------------------------------------------------------
def _upblock_kernel(x_ref, lt_ref, g_ref, b_ref, o_ref):
    """x_ref : (B*W,  Cin*H)      relu input, lane axis = Cin*H (dense)
       lt_ref: (Cin*H, K*Cout*OH) channel contraction + ky/oy scatter + BN scale
       g_ref : (B*OW, K*B*W)      0/1 kx/ox column scatter, block-diag over batch
       b_ref : (1, Cout*OH)       folded conv bias + BN shift
       o_ref : (B*OW, Cout*OH)    lane-dense output slab
    """
    rows = o_ref.shape[1]                                   # Cout * OH
    # ReLU (Dropout2d is identity in eval mode); full-width vregs (lanes = Cin*H).
    xr = jnp.maximum(x_ref[...], 0.0)
    # stage 1: one wide MXU matmul, lane axis = K*Cout*OH.
    zt = jnp.dot(xr, lt_ref[...], preferred_element_type=jnp.float32)  # (B*W, K*rows)
    k = zt.shape[1] // rows
    # Re-stack the K lane blocks of zt onto the sublane axis: (B*W, K*rows) ->
    # (K*B*W, rows).  Slices are at 128-lane boundaries -> pure vreg rearrangement.
    z_all = jnp.concatenate(
        [zt[:, j * rows:(j + 1) * rows] for j in range(k)], axis=0)
    # stage 2: single full-K MXU matmul scatters contributions onto output columns.
    y = jnp.dot(g_ref[...], z_all, preferred_element_type=jnp.float32)  # (B*OW, rows)
    o_ref[...] = (y + b_ref[...]).astype(o_ref.dtype)       # bias + BN shift


# --------------------------------------------------------------------------
# Wrapper-side (weight-only) preprocessing
# --------------------------------------------------------------------------
def _spread_matrices(in_size, k, stride=2, pad=1):
    """S[t, o, i] = 1  iff  o == stride*i - pad + t   (ConvTranspose scatter)."""
    out_size = (in_size - 1) * stride - 2 * pad + k
    i = jnp.arange(in_size)[None, None, :]
    t = jnp.arange(k)[:, None, None]
    o = jnp.arange(out_size)[None, :, None]
    return (o == stride * i - pad + t).astype(jnp.float32), out_size


def prepare_params(w_iokk, conv_bias, gamma, beta, mean, var, H, W, *,
                   batch_chunk, eps=1e-5, apply_norm=True):
    """Fold eval-mode BN into the ConvTranspose2d weights and build matmul operands.

    w_iokk: (Cin, Cout, K, K)  -- PyTorch ConvTranspose2d weight layout.
    Returns LT (Cin*H, K*Cout*OH), G (B*OW, K*B*W), b_row (1, Cout*OH).
    """
    Cin, Cout, K, _ = w_iokk.shape
    if apply_norm:
        scale = gamma / jnp.sqrt(var + eps)
        shift = beta - mean * scale
    else:                                       # outermost: no norm layer applied
        scale = jnp.ones((Cout,), jnp.float32)
        shift = jnp.zeros((Cout,), jnp.float32)
    w_eff = w_iokk * scale[None, :, None, None]
    bias_eff = conv_bias * scale + shift                              # (Cout,)

    Sy, OH = _spread_matrices(H, K)                                   # (K, OH, H)
    Sx, OW = _spread_matrices(W, K)                                   # (K, OW, W)
    # LT[(ci, iy), (kx, co, oy)] = sum_ky w_eff[ci, co, ky, kx] * Sy[ky, oy, iy]
    LT = jnp.einsum('icyx,yoh->ihxco', w_eff, Sy).reshape(Cin * H, K * Cout * OH)
    # G[(n, ox), (kx, n', ix)] = [n == n'] * Sx[kx, ox, ix]
    eye_b = jnp.eye(batch_chunk, dtype=jnp.float32)
    G = jnp.einsum('ab,koi->aokbi', eye_b, Sx).reshape(batch_chunk * OW,
                                                       K * batch_chunk * W)
    b_row = jnp.repeat(bias_eff, OH).reshape(1, Cout * OH)
    return LT, G, b_row


@functools.partial(jax.jit, static_argnames=("cout", "batch_chunk"))
def upblock_forward(x, lt, g, b_row, *, cout, batch_chunk):
    """Fused UNetUpBlock forward. x is NCHW (N, Cin, H, W); returns (N, Cout, 2H, 2W)."""
    N, Cin, H, W = x.shape
    rows = b_row.shape[1]                      # Cout * OH
    OH = rows // cout
    OW = g.shape[0] // batch_chunk
    nsteps = N // batch_chunk

    # Layout plumbing in XLA (cheap at these sizes): lane axis becomes Cin*H.
    x2t = jnp.transpose(x, (0, 3, 1, 2)).reshape(N * W, Cin * H)

    out2d = pl.pallas_call(
        _upblock_kernel,
        out_shape=jax.ShapeDtypeStruct((N * OW, rows), x.dtype),
        grid=(nsteps,),
        in_specs=[
            pl.BlockSpec((batch_chunk * W, Cin * H), lambda i: (i, 0)),
            pl.BlockSpec(lt.shape, lambda i: (0, 0)),                 # resident
            pl.BlockSpec(g.shape, lambda i: (0, 0)),                  # resident
            pl.BlockSpec(b_row.shape, lambda i: (0, 0)),              # resident
        ],
        out_specs=pl.BlockSpec((batch_chunk * OW, rows), lambda i: (i, 0)),
        compiler_params=pltpu.CompilerParams(
            dimension_semantics=("parallel",)),                       # v7x: 2 TCs
    )(x2t, lt, g, b_row)

    # (N*OW, Cout*OH) -> NCHW; contiguous lane-dense slab, cheap XLA transpose.
    return out2d.reshape(N, OW, cout, OH).transpose(0, 2, 3, 1)


# --------------------------------------------------------------------------
# Pure-JAX reference (independent path for correctness check)
# --------------------------------------------------------------------------
def _reference(x, w_iokk, conv_bias, gamma, beta, mean, var, eps=1e-5, apply_norm=True):
    xr = jnp.maximum(x, 0.0)                                  # ReLU (dropout eval = id)
    k = w_iokk.shape[2]
    p = k - 1 - 1                                             # k - 1 - padding
    rhs = jnp.transpose(w_iokk, (1, 0, 2, 3))[:, :, ::-1, ::-1]
    y = jax.lax.conv_general_dilated(
        xr, rhs, window_strides=(1, 1),
        padding=((p, p), (p, p)), lhs_dilation=(2, 2),
        dimension_numbers=('NCHW', 'OIHW', 'NCHW'))
    y = y + conv_bias.reshape(1, -1, 1, 1)
    if apply_norm:
        inv = gamma / jnp.sqrt(var + eps)
        y = (y - mean.reshape(1, -1, 1, 1)) * inv.reshape(1, -1, 1, 1) \
            + beta.reshape(1, -1, 1, 1)
    return y


# --------------------------------------------------------------------------
# Main
# --------------------------------------------------------------------------
if __name__ == "__main__":
    key = jax.random.PRNGKey(0)
    keys = jax.random.split(key, 8)

    # UNetUpBlock(input_nc=4, output_nc=4, norm_layer=BatchNorm2d, outermost=False,
    #             innermost=False, dropout=0.2, kernel_size=4, remove_skip=0,
    #             use_bias=True)  ->  ConvTranspose2d(8, 4, k=4, s=2, p=1) + BN(4)
    N = 2
    input_nc, output_nc = 4, 4
    upconv_inner_nc = input_nc * 2            # remove_skip = 0
    H = W = 16
    K = 4
    batch_chunk = 2                           # whole batch in one grid step (N small)

    x = jax.random.normal(keys[0], (N, upconv_inner_nc, H, W), jnp.float32)
    w = 0.2 * jax.random.normal(keys[1], (upconv_inner_nc, output_nc, K, K), jnp.float32)
    cb = 0.1 * jax.random.normal(keys[2], (output_nc,), jnp.float32)
    gamma = 1.0 + 0.1 * jax.random.normal(keys[3], (output_nc,), jnp.float32)
    beta = 0.1 * jax.random.normal(keys[4], (output_nc,), jnp.float32)
    mean = 0.1 * jax.random.normal(keys[5], (output_nc,), jnp.float32)
    var = 0.5 + jax.random.uniform(keys[6], (output_nc,), jnp.float32)

    assert N % batch_chunk == 0
    LT, G, b_row = prepare_params(w, cb, gamma, beta, mean, var, H, W,
                                  batch_chunk=batch_chunk, apply_norm=True)

    out = upblock_forward(x, LT, G, b_row, cout=output_nc, batch_chunk=batch_chunk)
    out = jax.block_until_ready(out)
    assert out.shape == (N, output_nc, 2 * H, 2 * W), out.shape

    ref = jax.block_until_ready(_reference(x, w, cb, gamma, beta, mean, var))
    err = float(jnp.abs(out - ref).max())
    assert jnp.allclose(out, ref, atol=2e-4, rtol=2e-4), err

    print("KERNEL_OK")
</pallas_src>

<mosaic_0001>
module attributes {stable_mosaic.version = 11 : i64} {
  func.func @_upblock_kernel(%arg0: i32, %arg1: memref<32x128xf32, #tpu.memory_space<vmem>>, %arg2: memref<128x512xf32, #tpu.memory_space<vmem>>, %arg3: memref<64x128xf32, #tpu.memory_space<vmem>>, %arg4: memref<1x128xf32, #tpu.memory_space<vmem>>, %arg5: memref<64x128xf32, #tpu.memory_space<vmem>>) attributes {dimension_semantics = [#tpu.dimension_semantics<parallel>], iteration_bounds = array<i64: 1>, scalar_prefetch = 0 : i64, scratch_operands = 0 : i64, tpu.core_type = #tpu.core_type<tc>, window_params = [{transform_indices = @transform_0, window_bounds = array<i64: 32, 128>}, {pipeline_mode = #tpu.pipeline_mode<synchronous>, transform_indices = @transform_1, window_bounds = array<i64: 128, 512>}, {pipeline_mode = #tpu.pipeline_mode<synchronous>, transform_indices = @transform_2, window_bounds = array<i64: 64, 128>}, {pipeline_mode = #tpu.pipeline_mode<synchronous>, transform_indices = @transform_3, window_bounds = array<i64: 1, 128>}, {transform_indices = @transform_4, window_bounds = array<i64: 64, 128>}]} {
    %c0 = arith.constant 0 : index
    %c0_0 = arith.constant 0 : index
    %0 = vector.load %arg1[%c0, %c0_0] : memref<32x128xf32, #tpu.memory_space<vmem>>, vector<32x128xf32>
    %cst = arith.constant 0.000000e+00 : f32
    %1 = vector.broadcast %cst : f32 to vector<32x128xf32>
    %2 = arith.maximumf %0, %1 : vector<32x128xf32>
    %c0_1 = arith.constant 0 : index
    %c0_2 = arith.constant 0 : index
    %3 = vector.load %arg2[%c0_1, %c0_2] : memref<128x512xf32, #tpu.memory_space<vmem>>, vector<128x512xf32>
    %cst_3 = arith.constant dense<0.000000e+00> : vector<32x512xf32>
    %4 = tpu.matmul %2, %3, %cst_3 {dimension_numbers = #tpu.dot_dimension_numbers<[1], [0], [0], [1], [0, 0, 1, 1], [], []>} : vector<32x128xf32>, vector<128x512xf32>, vector<32x512xf32> -> vector<32x512xf32>
    %5 = vector.extract_strided_slice %4 {offsets = [0, 0], sizes = [32, 128], strides = [1, 1]} : vector<32x512xf32> to vector<32x128xf32>
    %6 = vector.extract_strided_slice %4 {offsets = [0, 128], sizes = [32, 128], strides = [1, 1]} : vector<32x512xf32> to vector<32x128xf32>
    %7 = vector.extract_strided_slice %4 {offsets = [0, 256], sizes = [32, 128], strides = [1, 1]} : vector<32x512xf32> to vector<32x128xf32>
    %8 = vector.extract_strided_slice %4 {offsets = [0, 384], sizes = [32, 128], strides = [1, 1]} : vector<32x512xf32> to vector<32x128xf32>
    %9 = tpu.concatenate %5, %6, %7, %8 in 0 : vector<32x128xf32>, vector<32x128xf32>, vector<32x128xf32>, vector<32x128xf32> -> vector<128x128xf32>
    %c0_4 = arith.constant 0 : index
    %c0_5 = arith.constant 0 : index
    %10 = vector.load %arg3[%c0_4, %c0_5] : memref<64x128xf32, #tpu.memory_space<vmem>>, vector<64x128xf32>
    %cst_6 = arith.constant dense<0.000000e+00> : vector<64x128xf32>
    %11 = tpu.matmul %10, %9, %cst_6 {dimension_numbers = #tpu.dot_dimension_numbers<[1], [0], [0], [1], [0, 0, 1, 1], [], []>} : vector<64x128xf32>, vector<128x128xf32>, vector<64x128xf32> -> vector<64x128xf32>
    %c0_7 = arith.constant 0 : index
    %c0_8 = arith.constant 0 : index
    %12 = vector.load %arg4[%c0_7, %c0_8] : memref<1x128xf32, #tpu.memory_space<vmem>>, vector<1x128xf32>
    %13 = vector.broadcast %12 : vector<1x128xf32> to vector<64x128xf32>
    %14 = arith.addf %11, %13 : vector<64x128xf32>
    %c0_9 = arith.constant 0 : index
    %c0_10 = arith.constant 0 : index
    %15 = vector.load %arg5[%c0_9, %c0_10] : memref<64x128xf32, #tpu.memory_space<vmem>>, vector<64x128xf32>
    tpu.vector_store %arg5[%c0_9, %c0_10], %14 {strides = array<i32>} : memref<64x128xf32, #tpu.memory_space<vmem>>, vector<64x128xf32>,
    return
  }
  func.func @transform_0(%arg0: i32) -> (i32, i32) {
    %c0_i32 = arith.constant 0 : i32
    %c0_i32_0 = arith.constant 0 : i32
    return %arg0, %c0_i32 : i32, i32
  }
  func.func @transform_1(%arg0: i32) -> (i32, i32) {
    %c0_i32 = arith.constant 0 : i32
    %c0_i32_0 = arith.constant 0 : i32
    %c0_i32_1 = arith.constant 0 : i32
    return %c0_i32, %c0_i32_0 : i32, i32
  }
  func.func @transform_2(%arg0: i32) -> (i32, i32) {
    %c0_i32 = arith.constant 0 : i32
    %c0_i32_0 = arith.constant 0 : i32
    %c0_i32_1 = arith.constant 0 : i32
    return %c0_i32, %c0_i32_0 : i32, i32
  }
  func.func @transform_3(%arg0: i32) -> (i32, i32) {
    %c0_i32 = arith.constant 0 : i32
    %c0_i32_0 = arith.constant 0 : i32
    %c0_i32_1 = arith.constant 0 : i32
    return %c0_i32, %c0_i32_0 : i32, i32
  }
  func.func @transform_4(%arg0: i32) -> (i32, i32) {
    %c0_i32 = arith.constant 0 : i32
    %c0_i32_0 = arith.constant 0 : i32
    return %arg0, %c0_i32 : i32, i32
  }
}

</mosaic_0001>

<llo_original>
// kernel: upblock_forward.1
$region0: #{upblock_forward.1}
  #allocation0 [shape = 'u32[]', space=smem, size = 0x4, offset = 0x4, fixed_abs, tag = 'smem constant byte address 0x4 - core index']
  #allocation1 [shape = 'u32[144,128]{1,0:T(1,128)}', space=vmem, size = 0x12000, scoped, tag = 'internal scratch']
  %s0 = inlined_call_operand.vmem [shape: f32[32,128], index: 0, kind: input, shape index: {}]
  %s1 = inlined_call_operand.vmem [shape: f32[128,512], index: 1, kind: input, shape index: {}]
  %s2 = inlined_call_operand.vmem [shape: f32[64,128], index: 2, kind: input, shape index: {}]
  %s3 = inlined_call_operand.vmem [shape: f32[1,128], index: 3, kind: input, shape index: {}]
  %s4 = inlined_call_operand.vmem [shape: f32[64,128], index: 4, kind: output, shape index: {}]
  %s5 = sld [smem:[#allocation0]]
  $region26: #{upblock_forward.1} parent=0
    _
  %s7 = ssub.s32 1, %s5
  %s8 = scalar_select 0, %s7, %s5
  // Predicated region
  $region2: #{upblock_forward.1} parent=0 // pred_check
    _
  $region3: #{upblock_forward.1} parent=0 // pred_check_branch
    %10 = sbr.rel (0) target = $region5
  $region4: #{upblock_forward.1} parent=0 // pred_region
    _
  $region5: #{upblock_forward.1} parent=0 // pred_fallthru
    _
  // Predicated region
  $region6: #{upblock_forward.1} parent=0 // pred_check
    _
  $region7: #{upblock_forward.1} parent=0 // pred_check_branch
    %12 = sbr.rel (0) target = $region9
  $region8: #{upblock_forward.1} parent=0 // pred_region
    _
  $region9: #{upblock_forward.1} parent=0 // pred_fallthru
    _
  // Predicated region
  $region10: #{upblock_forward.1} parent=0 // pred_check
    _
  $region11: #{upblock_forward.1} parent=0 // pred_check_branch
    %14 = sbr.rel (0) target = $region13
  $region12: #{upblock_forward.1} parent=0 // pred_region
    _
  $region13: #{upblock_forward.1} parent=0 // pred_fallthru
    _
  // Predicated region
  $region14: #{upblock_forward.1} parent=0 // pred_check
    _
  $region15: #{upblock_forward.1} parent=0 // pred_check_branch
    %16 = sbr.rel (0) target = $region17
  $region16: #{upblock_forward.1} parent=0 // pred_region
    _
  $region17: #{upblock_forward.1} parent=0 // pred_fallthru
    _
  %v17 = vld [vmem:[%s0] sm:$0xff]
  %v18 = vld [vmem:[%s0 + $0x8] sm:$0xff]
  %v19 = vld [vmem:[%s0 + $0x10] sm:$0xff]
  %v20 = vld [vmem:[%s0 + $0x18] sm:$0xff]
  %v21 = vmax.f32 %v17, 0.0
  %v22 = vmax.f32 %v18, 0.0
  %v23 = vmax.f32 %v19, 0.0
  %v24 = vmax.f32 %v20, 0.0
  %v25 = vld [vmem:[%s1] sm:$0xff]
  %v26 = vld [vmem:[%s1 + $0x8] sm:$0xff]
  %v27 = vld [vmem:[%s1 + $0x10] sm:$0xff]
  %v28 = vld [vmem:[%s1 + $0x18] sm:$0xff]
  %v29 = vld [vmem:[%s1 + $0x20] sm:$0xff]
  %v30 = vld [vmem:[%s1 + $0x28] sm:$0xff]
  %v31 = vld [vmem:[%s1 + $0x30] sm:$0xff]
  %v32 = vld [vmem:[%s1 + $0x38] sm:$0xff]
  %v33 = vld [vmem:[%s1 + $0x40] sm:$0xff]
  %v34 = vld [vmem:[%s1 + $0x48] sm:$0xff]
  %v35 = vld [vmem:[%s1 + $0x50] sm:$0xff]
  %v36 = vld [vmem:[%s1 + $0x58] sm:$0xff]
  %v37 = vld [vmem:[%s1 + $0x60] sm:$0xff]
  %v38 = vld [vmem:[%s1 + $0x68] sm:$0xff]
  %v39 = vld [vmem:[%s1 + $0x70] sm:$0xff]
  %v40 = vld [vmem:[%s1 + $0x78] sm:$0xff]
  %v41 = vld [vmem:[%s1 + $0x80] sm:$0xff]
  %v42 = vld [vmem:[%s1 + $0x88] sm:$0xff]
  %v43 = vld [vmem:[%s1 + $0x90] sm:$0xff]
  %v44 = vld [vmem:[%s1 + $0x98] sm:$0xff]
  %v45 = vld [vmem:[%s1 + $0xa0] sm:$0xff]
  %v46 = vld [vmem:[%s1 + $0xa8] sm:$0xff]
  %v47 = vld [vmem:[%s1 + $0xb0] sm:$0xff]
  %v48 = vld [vmem:[%s1 + $0xb8] sm:$0xff]
  %v49 = vld [vmem:[%s1 + $0xc0] sm:$0xff]
  %v50 = vld [vmem:[%s1 + $0xc8] sm:$0xff]
  %v51 = vld [vmem:[%s1 + $0xd0] sm:$0xff]
  %v52 = vld [vmem:[%s1 + $0xd8] sm:$0xff]
  %v53 = vld [vmem:[%s1 + $0xe0] sm:$0xff]
  %v54 = vld [vmem:[%s1 + $0xe8] sm:$0xff]
  %v55 = vld [vmem:[%s1 + $0xf0] sm:$0xff]
  %v56 = vld [vmem:[%s1 + $0xf8] sm:$0xff]
  %v57 = vld [vmem:[%s1 + $0x100] sm:$0xff]
  %v58 = vld [vmem:[%s1 + $0x108] sm:$0xff]
  %v59 = vld [vmem:[%s1 + $0x110] sm:$0xff]
  %v60 = vld [vmem:[%s1 + $0x118] sm:$0xff]
  %v61 = vld [vmem:[%s1 + $0x120] sm:$0xff]
  %v62 = vld [vmem:[%s1 + $0x128] sm:$0xff]
  %v63 = vld [vmem:[%s1 + $0x130] sm:$0xff]
  %v64 = vld [vmem:[%s1 + $0x138] sm:$0xff]
  %v65 = vld [vmem:[%s1 + $0x140] sm:$0xff]
  %v66 = vld [vmem:[%s1 + $0x148] sm:$0xff]
  %v67 = vld [vmem:[%s1 + $0x150] sm:$0xff]
  %v68 = vld [vmem:[%s1 + $0x158] sm:$0xff]
  %v69 = vld [vmem:[%s1 + $0x160] sm:$0xff]
  %v70 = vld [vmem:[%s1 + $0x168] sm:$0xff]
  %v71 = vld [vmem:[%s1 + $0x170] sm:$0xff]
  %v72 = vld [vmem:[%s1 + $0x178] sm:$0xff]
  %v73 = vld [vmem:[%s1 + $0x180] sm:$0xff]
  %v74 = vld [vmem:[%s1 + $0x188] sm:$0xff]
  %v75 = vld [vmem:[%s1 + $0x190] sm:$0xff]
  %v76 = vld [vmem:[%s1 + $0x198] sm:$0xff]
  %v77 = vld [vmem:[%s1 + $0x1a0] sm:$0xff]
  %v78 = vld [vmem:[%s1 + $0x1a8] sm:$0xff]
  %v79 = vld [vmem:[%s1 + $0x1b0] sm:$0xff]
  %v80 = vld [vmem:[%s1 + $0x1b8] sm:$0xff]
  %v81 = vld [vmem:[%s1 + $0x1c0] sm:$0xff]
  %v82 = vld [vmem:[%s1 + $0x1c8] sm:$0xff]
  %v83 = vld [vmem:[%s1 + $0x1d0] sm:$0xff]
  %v84 = vld [vmem:[%s1 + $0x1d8] sm:$0xff]
  %v85 = vld [vmem:[%s1 + $0x1e0] sm:$0xff]
  %v86 = vld [vmem:[%s1 + $0x1e8] sm:$0xff]
  %v87 = vld [vmem:[%s1 + $0x1f0] sm:$0xff]
  %v88 = vld [vmem:[%s1 + $0x1f8] sm:$0xff]
  %89 = vmatprep.subr.mxu0 %v86
  %90 = vmatpush1.msra.mxu0 %v85
  %91 = vmatprep.subr.mxu0 %v82
  %92 = vmatpush1.msra.mxu0 %v81
  %93 = vmatprep.subr.mxu0 %v78
  %94 = vmatpush1.msra.mxu0 %v77
  %95 = vmatprep.subr.mxu0 %v74
  %96 = vmatpush1.msra.mxu0 %v73
  %97 = vmatprep.subr.mxu0 %v70
  %98 = vmatpush1.msra.mxu0 %v69
  %99 = vmatprep.subr.mxu0 %v66
  %100 = vmatpush1.msra.mxu0 %v65
  %101 = vmatprep.subr.mxu0 %v62
  %102 = vmatpush1.msra.mxu0 %v61
  %103 = vmatprep.subr.mxu0 %v58
  %104 = vmatpush1.msra.mxu0 %v57
  %105 = vmatprep.subr.mxu0 %v54
  %106 = vmatpush1.msra.mxu0 %v53
  %107 = vmatprep.subr.mxu0 %v50
  %108 = vmatpush1.msra.mxu0 %v49
  %109 = vmatprep.subr.mxu0 %v46
  %110 = vmatpush1.msra.mxu0 %v45
  %111 = vmatprep.subr.mxu0 %v42
  %112 = vmatpush1.msra.mxu0 %v41
  %113 = vmatprep.subr.mxu0 %v38
  %114 = vmatpush1.msra.mxu0 %v37
  %115 = vmatprep.subr.mxu0 %v34
  %116 = vmatpush1.msra.mxu0 %v33
  %117 = vmatprep.subr.mxu0 %v30
  %118 = vmatpush1.msra.mxu0 %v29
  %119 = vmatprep.subr.mxu0 %v26
  %120 = vmatpush1.msra.mxu0 %v25
  %121 = vmatprep.subr.mxu0 0.0
  %122 = vmatpush2.msra.mxu0 0.0
  %123 = vmatprep.subr.mxu0 0.0
  %124 = vmatpush2.msra.mxu0 0.0
  %125 = vmatprep.subr.mxu0 0.0
  %126 = vmatpush2.msra.mxu0 0.0
  %127 = vmatprep.subr.mxu0 0.0
  %128 = vmatpush2.msra.mxu0 0.0
  %129 = vmatprep.subr.mxu0 0.0
  %130 = vmatpush2.msra.mxu0 0.0
  %131 = vmatprep.subr.mxu0 0.0
  %132 = vmatpush2.msra.mxu0 0.0
  %133 = vmatprep.subr.mxu0 0.0
  %134 = vmatpush2.msra.mxu0 0.0
  %135 = vmatprep.subr.mxu0 0.0
  %136 = vmatpush2.msra.mxu0 0.0
  %137 = vmatprep.subr.mxu0 0.0
  %138 = vmatpush2.msra.mxu0 0.0
  %139 = vmatprep.subr.mxu0 0.0
  %140 = vmatpush2.msra.mxu0 0.0
  %141 = vmatprep.subr.mxu0 0.0
  %142 = vmatpush2.msra.mxu0 0.0
  %143 = vmatprep.subr.mxu0 0.0
  %144 = vmatpush2.msra.mxu0 0.0
  %145 = vmatprep.subr.mxu0 0.0
  %146 = vmatpush2.msra.mxu0 0.0
  %147 = vmatprep.subr.mxu0 0.0
  %148 = vmatpush2.msra.mxu0 0.0
  %149 = vmatprep.subr.mxu0 0.0
  %150 = vmatpush2.msra.mxu0 0.0
  %151 = vmatprep.subr.mxu0 0.0
  %152 = vmatpush2.msra.mxu0 0.0
  %153 = vmatprep.mubr.f32.mxu0 0.0
  %154 = vmatmul.mubr.f32.gmra.mxu0 %v21
  %v155 = vpop.f32.mrf.mxu0
  %v156 = vadd.f32 0.0, %v155
  %v157 = vpop.f32.mrf.mxu0
  %v158 = vadd.f32 0.0, %v157
  %159 = vmatprep.mubr.f32.mxu0 0.0
  %160 = vmatmul.mubr.f32.gmra.mxu0 %v22
  %v161 = vpop.f32.mrf.mxu0
  %v162 = vadd.f32 0.0, %v161
  %v163 = vpop.f32.mrf.mxu0
  %v164 = vadd.f32 0.0, %v163
  %165 = vmatprep.mubr.f32.mxu0 0.0
  %166 = vmatmul.mubr.f32.gmra.mxu0 %v23
  %v167 = vpop.f32.mrf.mxu0
  %v168 = vadd.f32 0.0, %v167
  %v169 = vpop.f32.mrf.mxu0
  %v170 = vadd.f32 0.0, %v169
  %171 = vmatprep.mubr.f32.mxu0 0.0
  %172 = vmatmul.mubr.f32.gmra.mxu0 %v24
  %v173 = vpop.f32.mrf.mxu0
  %v174 = vadd.f32 0.0, %v173
  %v175 = vpop.f32.mrf.mxu0
  %v176 = vadd.f32 0.0, %v175
  %177 = vdwg.mxu0
  %178 = vmatprep.subr.mxu0 %v88
  %179 = vmatpush1.msra.mxu0 %v87
  %180 = vmatprep.subr.mxu0 %v84
  %181 = vmatpush1.msra.mxu0 %v83
  %182 = vmatprep.subr.mxu0 %v80
  %183 = vmatpush1.msra.mxu0 %v79
  %184 = vmatprep.subr.mxu0 %v76
  %185 = vmatpush1.msra.mxu0 %v75
  %186 = vmatprep.subr.mxu0 %v72
  %187 = vmatpush1.msra.mxu0 %v71
  %188 = vmatprep.subr.mxu0 %v68
  %189 = vmatpush1.msra.mxu0 %v67
  %190 = vmatprep.subr.mxu0 %v64
  %191 = vmatpush1.msra.mxu0 %v63
  %192 = vmatprep.subr.mxu0 %v60
  %193 = vmatpush1.msra.mxu0 %v59
  %194 = vmatprep.subr.mxu0 %v56
  %195 = vmatpush1.msra.mxu0 %v55
  %196 = vmatprep.subr.mxu0 %v52
  %197 = vmatpush1.msra.mxu0 %v51
  %198 = vmatprep.subr.mxu0 %v48
  %199 = vmatpush1.msra.mxu0 %v47
  %200 = vmatprep.subr.mxu0 %v44
  %201 = vmatpush1.msra.mxu0 %v43
  %202 = vmatprep.subr.mxu0 %v40
  %203 = vmatpush1.msra.mxu0 %v39
  %204 = vmatprep.subr.mxu0 %v36
  %205 = vmatpush1.msra.mxu0 %v35
  %206 = vmatprep.subr.mxu0 %v32
  %207 = vmatpush1.msra.mxu0 %v31
  %208 = vmatprep.subr.mxu0 %v28
  %209 = vmatpush1.msra.mxu0 %v27
  %210 = vmatprep.subr.mxu0 0.0
  %211 = vmatpush2.msra.mxu0 0.0
  %212 = vmatprep.subr.mxu0 0.0
  %213 = vmatpush2.msra.mxu0 0.0
  %214 = vmatprep.subr.mxu0 0.0
  %215 = vmatpush2.msra.mxu0 0.0
  %216 = vmatprep.subr.mxu0 0.0
  %217 = vmatpush2.msra.mxu0 0.0
  %218 = vmatprep.subr.mxu0 0.0
  %219 = vmatpush2.msra.mxu0 0.0
  %220 = vmatprep.subr.mxu0 0.0
  %221 = vmatpush2.msra.mxu0 0.0
  %222 = vmatprep.subr.mxu0 0.0
  %223 = vmatpush2.msra.mxu0 0.0
  %224 = vmatprep.subr.mxu0 0.0
  %225 = vmatpush2.msra.mxu0 0.0
  %226 = vmatprep.subr.mxu0 0.0
  %227 = vmatpush2.msra.mxu0 0.0
  %228 = vmatprep.subr.mxu0 0.0
  %229 = vmatpush2.msra.mxu0 0.0
  %230 = vmatprep.subr.mxu0 0.0
  %231 = vmatpush2.msra.mxu0 0.0
  %232 = vmatprep.subr.mxu0 0.0
  %233 = vmatpush2.msra.mxu0 0.0
  %234 = vmatprep.subr.mxu0 0.0
  %235 = vmatpush2.msra.mxu0 0.0
  %236 = vmatprep.subr.mxu0 0.0
  %237 = vmatpush2.msra.mxu0 0.0
  %238 = vmatprep.subr.mxu0 0.0
  %239 = vmatpush2.msra.mxu0 0.0
  %240 = vmatprep.subr.mxu0 0.0
  %241 = vmatpush2.msra.mxu0 0.0
  %242 = vmatprep.mubr.f32.mxu0 0.0
  %243 = vmatmul.mubr.f32.gmra.mxu0 %v21
  %v244 = vpop.f32.mrf.mxu0
  %v245 = vadd.f32 0.0, %v244
  %v246 = vpop.f32.mrf.mxu0
  %v247 = vadd.f32 0.0, %v246
  %248 = vmatprep.mubr.f32.mxu0 0.0
  %249 = vmatmul.mubr.f32.gmra.mxu0 %v22
  %v250 = vpop.f32.mrf.mxu0
  %v251 = vadd.f32 0.0, %v250
  %v252 = vpop.f32.mrf.mxu0
  %v253 = vadd.f32 0.0, %v252
  %254 = vmatprep.mubr.f32.mxu0 0.0
  %255 = vmatmul.mubr.f32.gmra.mxu0 %v23
  %v256 = vpop.f32.mrf.mxu0
  %v257 = vadd.f32 0.0, %v256
  %v258 = vpop.f32.mrf.mxu0
  %v259 = vadd.f32 0.0, %v258
  %260 = vmatprep.mubr.f32.mxu0 0.0
  %261 = vmatmul.mubr.f32.gmra.mxu0 %v24
  %v262 = vpop.f32.mrf.mxu0
  %v263 = vadd.f32 0.0, %v262
  %v264 = vpop.f32.mrf.mxu0
  %v265 = vadd.f32 0.0, %v264
  %266 = vdwg.mxu0
  %v267 = vld [vmem:[%s2] sm:$0xff]
  %v268 = vld [vmem:[%s2 + $0x8] sm:$0xff]
  %v269 = vld [vmem:[%s2 + $0x10] sm:$0xff]
  %v270 = vld [vmem:[%s2 + $0x18] sm:$0xff]
  %v271 = vld [vmem:[%s2 + $0x20] sm:$0xff]
  %v272 = vld [vmem:[%s2 + $0x28] sm:$0xff]
  %v273 = vld [vmem:[%s2 + $0x30] sm:$0xff]
  %v274 = vld [vmem:[%s2 + $0x38] sm:$0xff]
  %v275 = vld [vmem:[%s3] sm:$0x1]
  %v277 = vlaneseq
  %v278 = vshrl.u32 %v277, 7
  %v279 = vsub.s32 0, %v278
  %v280 = vrot.slane %v275, %v279
  %282 = vmatprep.subr.mxu0 0.0
  %283 = vmatpush1.msra.mxu0 %v265
  %284 = vmatprep.subr.mxu0 0.0
  %285 = vmatpush1.msra.mxu0 %v259
  %286 = vmatprep.subr.mxu0 0.0
  %287 = vmatpush1.msra.mxu0 %v253
  %288 = vmatprep.subr.mxu0 0.0
  %289 = vmatpush1.msra.mxu0 %v247
  %290 = vmatprep.subr.mxu0 0.0
  %291 = vmatpush1.msra.mxu0 %v263
  %292 = vmatprep.subr.mxu0 0.0
  %293 = vmatpush1.msra.mxu0 %v257
  %294 = vmatprep.subr.mxu0 0.0
  %295 = vmatpush1.msra.mxu0 %v251
  %296 = vmatprep.subr.mxu0 0.0
  %297 = vmatpush1.msra.mxu0 %v245
  %298 = vmatprep.subr.mxu0 0.0
  %299 = vmatpush1.msra.mxu0 %v176
  %300 = vmatprep.subr.mxu0 0.0
  %301 = vmatpush1.msra.mxu0 %v170
  %302 = vmatprep.subr.mxu0 0.0
  %303 = vmatpush1.msra.mxu0 %v164
  %304 = vmatprep.subr.mxu0 0.0
  %305 = vmatpush1.msra.mxu0 %v158
  %306 = vmatprep.subr.mxu0 0.0
  %307 = vmatpush1.msra.mxu0 %v174
  %308 = vmatprep.subr.mxu0 0.0
  %309 = vmatpush1.msra.mxu0 %v168
  %310 = vmatprep.subr.mxu0 0.0
  %311 = vmatpush1.msra.mxu0 %v162
  %312 = vmatprep.subr.mxu0 0.0
  %313 = vmatpush1.msra.mxu0 %v156
  %314 = vmatprep.subr.mxu0 0.0
  %315 = vmatpush2.msra.mxu0 0.0
  %316 = vmatprep.subr.mxu0 0.0
  %317 = vmatpush2.msra.mxu0 0.0
  %318 = vmatprep.subr.mxu0 0.0
  %319 = vmatpush2.msra.mxu0 0.0
  %320 = vmatprep.subr.mxu0 0.0
  %321 = vmatpush2.msra.mxu0 0.0
  %322 = vmatprep.subr.mxu0 0.0
  %323 = vmatpush2.msra.mxu0 0.0
  %324 = vmatprep.subr.mxu0 0.0
  %325 = vmatpush2.msra.mxu0 0.0
  %326 = vmatprep.subr.mxu0 0.0
  %327 = vmatpush2.msra.mxu0 0.0
  %328 = vmatprep.subr.mxu0 0.0
  %329 = vmatpush2.msra.mxu0 0.0
  %330 = vmatprep.subr.mxu0 0.0
  %331 = vmatpush2.msra.mxu0 0.0
  %332 = vmatprep.subr.mxu0 0.0
  %333 = vmatpush2.msra.mxu0 0.0
  %334 = vmatprep.subr.mxu0 0.0
  %335 = vmatpush2.msra.mxu0 0.0
  %336 = vmatprep.subr.mxu0 0.0
  %337 = vmatpush2.msra.mxu0 0.0
  %338 = vmatprep.subr.mxu0 0.0
  %339 = vmatpush2.msra.mxu0 0.0
  %340 = vmatprep.subr.mxu0 0.0
  %341 = vmatpush2.msra.mxu0 0.0
  %342 = vmatprep.subr.mxu0 0.0
  %343 = vmatpush2.msra.mxu0 0.0
  %344 = vmatprep.subr.mxu0 0.0
  %345 = vmatpush2.msra.mxu0 0.0
  %346 = vmatprep.mubr.f32.mxu0 0.0
  %347 = vmatmul.mubr.f32.gmra.mxu0 %v267
  %v348 = vpop.f32.mrf.mxu0
  %v349 = vadd.f32 %v280, %v348
  %v350 = vpop.f32.mrf.mxu0
  %351 = vmatprep.mubr.f32.mxu0 0.0
  %352 = vmatmul.mubr.f32.gmra.mxu0 %v268
  %v353 = vpop.f32.mrf.mxu0
  %v354 = vadd.f32 %v280, %v353
  %v355 = vpop.f32.mrf.mxu0
  %356 = vmatprep.mubr.f32.mxu0 0.0
  %357 = vmatmul.mubr.f32.gmra.mxu0 %v269
  %v358 = vpop.f32.mrf.mxu0
  %v359 = vadd.f32 %v280, %v358
  %v360 = vpop.f32.mrf.mxu0
  %361 = vmatprep.mubr.f32.mxu0 0.0
  %362 = vmatmul.mubr.f32.gmra.mxu0 %v270
  %v363 = vpop.f32.mrf.mxu0
  %v364 = vadd.f32 %v280, %v363
  %v365 = vpop.f32.mrf.mxu0
  %366 = vmatprep.mubr.f32.mxu0 0.0
  %367 = vmatmul.mubr.f32.gmra.mxu0 %v271
  %v368 = vpop.f32.mrf.mxu0
  %v369 = vadd.f32 %v280, %v368
  %v370 = vpop.f32.mrf.mxu0
  %371 = vmatprep.mubr.f32.mxu0 0.0
  %372 = vmatmul.mubr.f32.gmra.mxu0 %v272
  %v373 = vpop.f32.mrf.mxu0
  %v374 = vadd.f32 %v280, %v373
  %v375 = vpop.f32.mrf.mxu0
  %376 = vmatprep.mubr.f32.mxu0 0.0
  %377 = vmatmul.mubr.f32.gmra.mxu0 %v273
  %v378 = vpop.f32.mrf.mxu0
  %v379 = vadd.f32 %v280, %v378
  %v380 = vpop.f32.mrf.mxu0
  %381 = vmatprep.mubr.f32.mxu0 0.0
  %382 = vmatmul.mubr.f32.gmra.mxu0 %v274
  %v383 = vpop.f32.mrf.mxu0
  %v384 = vadd.f32 %v280, %v383
  %v385 = vpop.f32.mrf.mxu0
  %386 = vdwg.mxu0
  %387 = vst [vmem:[%s4] sm:$0xff] %v349
  %388 = vst [vmem:[%s4 + $0x8] sm:$0xff] %v354
  %389 = vst [vmem:[%s4 + $0x10] sm:$0xff] %v359
  %390 = vst [vmem:[%s4 + $0x18] sm:$0xff] %v364
  %391 = vst [vmem:[%s4 + $0x20] sm:$0xff] %v369
  %392 = vst [vmem:[%s4 + $0x28] sm:$0xff] %v374
  %393 = vst [vmem:[%s4 + $0x30] sm:$0xff] %v379
  %394 = vst [vmem:[%s4 + $0x38] sm:$0xff] %v384
  // Predicated region
  $region18: #{upblock_forward.1} parent=0 // pred_check
    _
  $region19: #{upblock_forward.1} parent=0 // pred_check_branch
    %396 = sbr.rel (0) target = $region21
  $region20: #{upblock_forward.1} parent=0 // pred_region
    _
  $region21: #{upblock_forward.1} parent=0 // pred_fallthru
    _
  // Predicated region
  $region22: #{upblock_forward.1} parent=0 // pred_check
    _
  $region23: #{upblock_forward.1} parent=0 // pred_check_branch
    %398 = sbr.rel (0) target = $region25
  $region24: #{upblock_forward.1} parent=0 // pred_region
    _
  $region25: #{upblock_forward.1} parent=0 // pred_fallthru
    _

</llo_original>
